<compile_context>
chip_gen: v7x
topology: tpu7x:2x2x1
jax: 0.10.0
libtpu: 0.0.40
codegen_flags: <defaults>
</compile_context>

<pallas_src>
import functools

import jax
import jax.numpy as jnp
import numpy as np
from jax import lax
from jax.experimental import pallas as pl
from jax.experimental.pallas import tpu as pltpu


def _round_up(x, m):
    return (x + m - 1) // m * m


def _conv_kernel(x_ref, w_ref, b_ref, o_ref, *, wp2):
    """One (image, M-tile) step: fused space-to-depth GEMM, contraction K = 2*4*C.

    x_ref: (1, 1, KQp, TMH) bf16  q-stacked s2d slab for this M tile (+ Wp2-lane halo)
    w_ref: (2, Op, KQp)     bf16  per-p weight matrices (q folded into the K axis)
    b_ref: (Op, 1)          f32   bias (zero-padded)
    o_ref: (1, Op, TM)      bf16  lane-dense (128-multiple) output tile
    """
    tm = o_ref.shape[2]
    # Two consecutive dots accumulating into one f32 value: lets v7x use the MRB
    # in-place-accumulate path; on v5e/v6e it is a single VALU add (was 3 adds before).
    acc = jnp.dot(w_ref[0], x_ref[0, 0, :, 0:tm],
                  preferred_element_type=jnp.float32)
    # p=1 tap: lane offset wp2 is not 128-aligned, so Mosaic materializes one rotated
    # copy of the slab.  This is the single remaining unaligned access (the q taps'
    # +1 shifts were folded into K in the wrapper).
    acc = acc + jnp.dot(w_ref[1], x_ref[0, 0, :, wp2:wp2 + tm],
                        preferred_element_type=jnp.float32)
    # bias once at finalize, bf16 writeback (halves output HBM bytes).
    o_ref[0] = (acc + b_ref[...]).astype(o_ref.dtype)


def conv2d_pallas(x, weight, bias, *, stride=2, pad=1):
    """Conv2d(kernel=4, stride=2, padding=1) as a fused space-to-depth GEMM Pallas kernel.

    x:      (N, C, H, W)   float32, NCHW (PyTorch layout)
    weight: (O, C, 4, 4)   float32, OIHW (PyTorch layout)
    bias:   (O,)           float32
    returns (N, O, H//2, W//2) bfloat16, NCHW
    """
    N, C, H, W = x.shape
    O, Cw, KH, KW = weight.shape
    assert C == Cw and KH == 4 and KW == 4 and stride == 2 and pad == 1
    assert H % 2 == 0 and W % 2 == 0

    Ho, Wo = H // 2, W // 2
    Hp2, Wp2 = Ho + 1, Wo + 1          # space-to-depth spatial extent of the padded input
    K = 4 * C                          # s2d channel count
    KQ = 2 * K                         # q-stacked contraction depth per dot
    KQp = _round_up(KQ, 16)            # bf16 sublane packing
    Op = _round_up(O, 16)
    L = Hp2 * Wp2                      # flattened s2d spatial extent (row stride Wp2)
    MW = Ho * Wp2                      # output columns (one junk column per row)
    MWp = _round_up(MW, 128)           # lane-dense output width

    # M tile: 128..2048 lanes, capped so a double-buffered x slab stays ~<= 8 MiB
    # (keeps the footprint far under v7x's 64 MiB physical VMEM for any C).
    tm_cap = max(128, ((4 << 20) // (KQp * 2)) // 128 * 128)
    TM = int(min(2048, MWp, tm_cap))
    num_m = (MWp + TM - 1) // TM
    Mtot = num_m * TM
    TMH = _round_up(TM + Wp2, 128)     # invariant: p=1 tap reads Wp2 lanes past the tile
    Ltot = (num_m - 1) * TM + TMH      # invariant: Ltot >= L (all real data is covered)
    assert TMH >= TM + Wp2 and Ltot >= L

    # ---- wrapper glue: bf16 from the first pass, no 4x im2col in HBM ----
    x_pad = jnp.pad(x.astype(jnp.bfloat16), ((0, 0), (0, 0), (pad, pad), (pad, pad)))
    s2d = (x_pad.reshape(N, C, Hp2, 2, Wp2, 2)
                .transpose(0, 1, 3, 5, 2, 4)
                .reshape(N, K, L))                          # K axis ordered (c, a, b)
    # q-stack: fold the two q taps of the equivalent 2x2/stride-1 conv into K, so the
    # never-aligned +1 lane shifts are handled once here instead of inside the kernel.
    g0 = jnp.pad(s2d, ((0, 0), (0, 0), (0, Ltot - L)))
    g1 = jnp.pad(s2d[:, :, 1:], ((0, 0), (0, 0), (0, Ltot - (L - 1))))
    g = jnp.concatenate([g0, g1], axis=1)                   # (N, 2K, Ltot), K axis = (q, c, a, b)
    g = jnp.pad(g, ((0, 0), (0, KQp - KQ), (0, 0)))
    # Per-M-tile slabs with an explicit halo (Blocked BlockSpecs cannot express
    # overlapping windows); duplication is only Wp2/TM of the data, zero when num_m == 1.
    slabs = jnp.stack([lax.slice_in_dim(g, m * TM, m * TM + TMH, axis=2)
                       for m in range(num_m)], axis=1)      # (N, num_m, KQp, TMH)

    # per-p weight matrices of the equivalent 2x2/stride-1 conv, q folded into K
    w2 = (weight.reshape(O, C, 2, 2, 2, 2)                  # (O, C, p, a, q, b)
                .transpose(2, 4, 0, 1, 3, 5)                # (p, q, O, C, a, b)
                .reshape(2, 2, O, K)
                .transpose(0, 2, 1, 3)                      # (p, O, q, K)
                .reshape(2, O, KQ))
    w2 = jnp.pad(w2, ((0, 0), (0, Op - O), (0, KQp - KQ))).astype(jnp.bfloat16)
    b2 = jnp.pad(bias.astype(jnp.float32), (0, Op - O)).reshape(Op, 1)

    # VMEM limit derived from actual block sizes (double-buffered tiles + resident W/b),
    # floored at 16 MiB and capped at 96 MiB (v5e/v6e headroom; v7x stays far below 56 MiB
    # because TM is capped above).
    x_blk = KQp * TMH * 2
    o_blk = Op * TM * 2
    w_bytes = 2 * Op * KQp * 2
    vmem_limit = int(min(max(2 * x_blk + 2 * o_blk + w_bytes + Op * 4 + (4 << 20),
                             16 << 20), 96 << 20))

    cost = pl.CostEstimate(
        flops=4 * N * num_m * Op * KQp * TM,                # 2 dots per step
        transcendentals=0,
        bytes_accessed=int(slabs.size * 2 + w2.size * 2 + b2.size * 4 + N * Op * Mtot * 2),
    )

    out = pl.pallas_call(
        functools.partial(_conv_kernel, wp2=Wp2),
        out_shape=jax.ShapeDtypeStruct((N, Op, Mtot), jnp.bfloat16),
        grid=(N, num_m),
        in_specs=[
            pl.BlockSpec((1, 1, KQp, TMH), lambda n, m: (n, m, 0, 0)),   # x slab per (image, M tile)
            pl.BlockSpec((2, Op, KQp), lambda n, m: (0, 0, 0)),          # weights resident
            pl.BlockSpec((Op, 1), lambda n, m: (0, 0)),                  # bias resident
        ],
        out_specs=pl.BlockSpec((1, Op, TM), lambda n, m: (n, 0, m)),
        compiler_params=pltpu.CompilerParams(
            dimension_semantics=("parallel", "parallel"),    # batch x M tiles over the TCs
            vmem_limit_bytes=vmem_limit,
        ),
        cost_estimate=cost,
    )(slabs, w2, b2)

    # drop padded output channels and junk columns; already NCHW-major, no transpose
    out = out[:, :O, :MW].reshape(N, O, Ho, Wp2)[:, :, :, :Wo]
    return out


def conv_module_forward(x, weight, bias, reinit_key):
    """Mirrors Conv.forward: run the conv (result discarded), then return a freshly
    N(0,1)-initialized tensor of the weight's shape (torch.nn.init.normal_)."""
    y = conv2d_pallas(x, weight, bias)            # computed, then discarded (as in PyTorch)
    # TODO(synk): PyTorch mutates self.conv.weight in place; JAX is functional, so the
    # re-initialized weight is returned instead of mutating module state.
    new_weight = jax.random.normal(reinit_key, weight.shape, dtype=weight.dtype)
    return new_weight, y


if __name__ == "__main__":
    input_size, output_size = 4, 8
    N, H, W = 2, 16, 16

    key = jax.random.PRNGKey(0)
    kx, kw, kb, kre = jax.random.split(key, 4)

    x = jax.random.normal(kx, (N, input_size, H, W), dtype=jnp.float32)
    # deterministic synthetic parameter init (shapes from nn.Conv2d(4, 8, 4, padding=1, stride=2))
    fan_in = input_size * 4 * 4
    bound = 1.0 / np.sqrt(fan_in)
    weight = jax.random.uniform(kw, (output_size, input_size, 4, 4),
                                minval=-bound, maxval=bound, dtype=jnp.float32)
    bias = jax.random.uniform(kb, (output_size,), minval=-bound, maxval=bound,
                              dtype=jnp.float32)

    new_weight, conv_out = conv_module_forward(x, weight, bias, kre)
    new_weight = jax.block_until_ready(new_weight)
    conv_out = jax.block_until_ready(conv_out)

    # sanity-check the Pallas conv hot path against an accurate XLA reference
    # (bf16 MXU inputs + bf16 output writeback -> loosened tolerance)
    ref = lax.conv_general_dilated(
        x, weight, window_strides=(2, 2), padding=((1, 1), (1, 1)),
        dimension_numbers=("NCHW", "OIHW", "NCHW"),
        precision=lax.Precision.HIGHEST) + bias[None, :, None, None]
    np.testing.assert_allclose(np.asarray(conv_out, dtype=np.float32), np.asarray(ref),
                               rtol=3e-2, atol=3e-2)
    assert new_weight.shape == (output_size, input_size, 4, 4)
    assert conv_out.shape == (N, output_size, H // 2, W // 2)

    print("KERNEL_OK")
</pallas_src>

<mosaic_0001>
module attributes {stable_mosaic.version = 11 : i64} {
  func.func @_conv_kernel(%arg0: i32, %arg1: i32, %arg2: memref<1x1x32x256xbf16, #tpu.memory_space<vmem>>, %arg3: memref<2x16x32xbf16, #tpu.memory_space<vmem>>, %arg4: memref<16x1xf32, #tpu.memory_space<vmem>>, %arg5: memref<1x16x128xbf16, #tpu.memory_space<vmem>>) attributes {dimension_semantics = [#tpu.dimension_semantics<parallel>, #tpu.dimension_semantics<parallel>], iteration_bounds = array<i64: 2, 1>, scalar_prefetch = 0 : i64, scratch_operands = 0 : i64, tpu.core_type = #tpu.core_type<tc>, window_params = [{transform_indices = @transform_0, window_bounds = array<i64: 1, 1, 32, 256>}, {pipeline_mode = #tpu.pipeline_mode<synchronous>, transform_indices = @transform_1, window_bounds = array<i64: 2, 16, 32>}, {pipeline_mode = #tpu.pipeline_mode<synchronous>, transform_indices = @transform_2, window_bounds = array<i64: 16, 1>}, {transform_indices = @transform_3, window_bounds = array<i64: 1, 16, 128>}]} {
    %c0 = arith.constant 0 : index
    %c0_0 = arith.constant 0 : index
    %c0_1 = arith.constant 0 : index
    %0 = vector.load %arg3[%c0, %c0_0, %c0_1] : memref<2x16x32xbf16, #tpu.memory_space<vmem>>, vector<1x16x32xbf16>
    %1 = vector.shape_cast %0 : vector<1x16x32xbf16> to vector<16x32xbf16>
    %c0_2 = arith.constant 0 : index
    %c0_3 = arith.constant 0 : index
    %c0_4 = arith.constant 0 : index
    %c0_5 = arith.constant 0 : index
    %2 = vector.load %arg2[%c0_2, %c0_3, %c0_4, %c0_5] : memref<1x1x32x256xbf16, #tpu.memory_space<vmem>>, vector<1x1x32x128xbf16>
    %3 = vector.shape_cast %2 : vector<1x1x32x128xbf16> to vector<32x128xbf16>
    %cst = arith.constant dense<0.000000e+00> : vector<16x128xf32>
    %4 = tpu.matmul %1, %3, %cst {dimension_numbers = #tpu.dot_dimension_numbers<[1], [0], [0], [1], [0, 0, 1, 1], [], []>} : vector<16x32xbf16>, vector<32x128xbf16>, vector<16x128xf32> -> vector<16x128xf32>
    %c1 = arith.constant 1 : index
    %c0_6 = arith.constant 0 : index
    %c0_7 = arith.constant 0 : index
    %5 = vector.load %arg3[%c1, %c0_6, %c0_7] : memref<2x16x32xbf16, #tpu.memory_space<vmem>>, vector<1x16x32xbf16>
    %6 = vector.shape_cast %5 : vector<1x16x32xbf16> to vector<16x32xbf16>
    %c0_8 = arith.constant 0 : index
    %c0_9 = arith.constant 0 : index
    %c0_10 = arith.constant 0 : index
    %c9 = arith.constant 9 : index
    %7 = vector.load %arg2[%c0_8, %c0_9, %c0_10, %c9] : memref<1x1x32x256xbf16, #tpu.memory_space<vmem>>, vector<1x1x32x128xbf16>
    %8 = vector.shape_cast %7 : vector<1x1x32x128xbf16> to vector<32x128xbf16>
    %cst_11 = arith.constant dense<0.000000e+00> : vector<16x128xf32>
    %9 = tpu.matmul %6, %8, %cst_11 {dimension_numbers = #tpu.dot_dimension_numbers<[1], [0], [0], [1], [0, 0, 1, 1], [], []>} : vector<16x32xbf16>, vector<32x128xbf16>, vector<16x128xf32> -> vector<16x128xf32>
    %10 = arith.addf %4, %9 : vector<16x128xf32>
    %c0_12 = arith.constant 0 : index
    %c0_13 = arith.constant 0 : index
    %11 = vector.load %arg4[%c0_12, %c0_13] : memref<16x1xf32, #tpu.memory_space<vmem>>, vector<16x1xf32>
    %12 = vector.broadcast %11 : vector<16x1xf32> to vector<16x128xf32>
    %13 = arith.addf %10, %12 : vector<16x128xf32>
    %14 = arith.truncf %13 : vector<16x128xf32> to vector<16x128xbf16>
    %c0_14 = arith.constant 0 : index
    %c0_15 = arith.constant 0 : index
    %c0_16 = arith.constant 0 : index
    %15 = vector.load %arg5[%c0_14, %c0_15, %c0_16] : memref<1x16x128xbf16, #tpu.memory_space<vmem>>, vector<1x16x128xbf16>
    %16 = vector.shape_cast %15 : vector<1x16x128xbf16> to vector<16x128xbf16>
    %17 = vector.shape_cast %14 : vector<16x128xbf16> to vector<1x16x128xbf16>
    tpu.vector_store %arg5[%c0_14, %c0_15, %c0_16], %17 {strides = array<i32>} : memref<1x16x128xbf16, #tpu.memory_space<vmem>>, vector<1x16x128xbf16>,
    return
  }
  func.func @transform_0(%arg0: i32, %arg1: i32) -> (i32, i32, i32, i32) {
    %c0_i32 = arith.constant 0 : i32
    %c0_i32_0 = arith.constant 0 : i32
    %c0_i32_1 = arith.constant 0 : i32
    return %arg0, %arg1, %c0_i32, %c0_i32_0 : i32, i32, i32, i32
  }
  func.func @transform_1(%arg0: i32, %arg1: i32) -> (i32, i32, i32) {
    %c0_i32 = arith.constant 0 : i32
    %c0_i32_0 = arith.constant 0 : i32
    %c0_i32_1 = arith.constant 0 : i32
    %c0_i32_2 = arith.constant 0 : i32
    return %c0_i32, %c0_i32_0, %c0_i32_1 : i32, i32, i32
  }
  func.func @transform_2(%arg0: i32, %arg1: i32) -> (i32, i32) {
    %c0_i32 = arith.constant 0 : i32
    %c0_i32_0 = arith.constant 0 : i32
    %c0_i32_1 = arith.constant 0 : i32
    return %c0_i32, %c0_i32_0 : i32, i32
  }
  func.func @transform_3(%arg0: i32, %arg1: i32) -> (i32, i32, i32) {
    %c0_i32 = arith.constant 0 : i32
    %c0_i32_0 = arith.constant 0 : i32
    return %arg0, %c0_i32, %arg1 : i32, i32, i32
  }
}

</mosaic_0001>

<llo_original>
// kernel: tpu_custom_call.1
$region0: #{tpu_custom_call.1}
  #allocation0 [shape = 'u32[]', space=smem, size = 0x4, offset = 0x4, fixed_abs, tag = 'smem constant byte address 0x4 - core index']
  #allocation1 [shape = 'u32[144,128]{1,0:T(1,128)}', space=vmem, size = 0x12000, scoped, tag = 'internal scratch']
  %s0 = inlined_call_operand.hbm [shape: bf16[2,1,32,256], index: 0, kind: input, shape index: {}]
  %s1 = inlined_call_operand.vmem [shape: bf16[2,16,32], index: 1, kind: input, shape index: {}]
  %s2 = inlined_call_operand.vmem [shape: f32[16,1], index: 2, kind: input, shape index: {}]
  %s3 = inlined_call_operand.hbm [shape: bf16[2,16,128], index: 3, kind: output, shape index: {}]
  %s4 = sld [smem:[#allocation0]]
  $region49: #{tpu_custom_call.1} parent=0
    _
  %s6 = ssub.s32 1, %s4
  %s7 = scalar_select 0, %s6, %s4
  $region1: #{tpu_custom_call.1} parent=0
    #allocation2 [shape = 'u8[32768]{0}', space=vmem, size = 0x8000, scoped, tag = 'input window, operand 0']
    #allocation3 [shape = 's32[2]{0}', space=sflag, size = 0x8, scoped, tag = 'scoped memory for tpu_custom_call.1']
    #allocation4 [shape = 's32[2]{0}', space=sflag, size = 0x8, scoped, tag = 'scoped memory for tpu_custom_call.1']
    #allocation5 [shape = 'u8[8192]{0}', space=vmem, size = 0x2000, scoped, tag = 'output window, operand 0']
    %8 = vsyncpa [#allocation3], 0
    %s9 = scalar_lea.sflag [#allocation3], 1
    %10 = vsyncpa %s9, 0
    %11 = vsyncpa [#allocation4], 0
    %s12 = scalar_lea.sflag [#allocation4], 1
    %13 = vsyncpa %s12, 0
    loop: start=0, step=1, limit=4
    $region2: #{tpu_custom_call.1} parent=1 // loop_pre_header
      _
    $region3: #{tpu_custom_call.1} parent=1 // loop_header
      %s15 = sphi 0, %s19
      %p16 = scmp.ge.s32.totalorder %s15, 4
      %s22 = sphi 0, %s34
      %s23 = sphi 0, %s30
      %s24 = sphi 0, %s22
      %s25 = sphi 0, %s23
      %s26 = sphi 0, %s24
      %s27 = sphi 0, %s25
      %s39 = sphi 0, %s41
      %s42 = sphi 0, %s39
      %s43 = sphi 0, %s42
      %s59 = sphi 0, %s43
      %s63 = sphi 0, %s63
      %s65 = sphi 0, %s63
      %s66 = sphi 0, %s65
      %s80 = sphi 0, %s66
      %s84 = sphi 0, %s84
      %s86 = sphi 0, %s84
      %s87 = sphi 0, %s86
      %s101 = sphi 0, %s87
      %s109 = sphi 0, %s111
      %s112 = sphi 0, %s109
      %s113 = sphi 0, %s112
      %s129 = sphi 0, %s113
    $region4: #{tpu_custom_call.1} parent=1 // loop_header_branch
      %18 = sbr.rel (%p16) target = $region8
    $region5: #{tpu_custom_call.1} parent=1 // loop_body
      %s20 = ssub.s32 %s15, 1
      %s21 = ssub.s32 %s15, 2
      %s28 = sadd.s32 1, %s23
      %p29 = scmp.ge.s32.totalorder %s28, 1
      %s30 = scalar_select %p29, 0, %s28
      %s31 = sadd.s32 1, %s22
      %s32 = scalar_select %p29, %s31, %s22
      %p33 = scmp.ge.s32.totalorder %s32, 2
      %s34 = scalar_select %p33, 0, %s32
      %s35 = ssub.s32 %s22, %s34
      %s36 = ssub.s32 %s23, %s30
      %s37 = sor.u32 %s35, %s36
      %p38 = scmp.eq.s32.totalorder %s37, 0
      %s40 = sadd.s32 %s39, 1
      %s41 = scalar_select %p38, %s39, %s40
      %p44 = pneg %p38
      %p45 = scmp.eq.s32.totalorder %s15, 1
      %p46 = por %p44, %p45
      %p47 = scmp.ne.s32.totalorder %s39, %s42
      %p48 = scmp.eq.s32.totalorder %s15, 0
      %p49 = por %p47, %p48
      %p50 = scmp.ne.s32.totalorder %s39, %s42
      %p51 = scmp.eq.s32.totalorder %s20, 1
      %p52 = por %p50, %p51
      %p53 = scmp.ne.s32.totalorder %s42, %s43
      %p54 = scmp.eq.s32.totalorder %s20, 0
      %p55 = por %p53, %p54
      %p56 = scmp.ne.s32.totalorder %s42, %s43
      %p57 = scmp.eq.s32.totalorder %s21, 1
      %p58 = por %p56, %p57
      %p60 = scmp.ne.s32.totalorder %s43, %s59
      %p61 = scmp.eq.s32.totalorder %s21, 0
      %p62 = por %p60, %p61
      %s64 = sadd.s32 %s63, 1
      %p67 = scmp.eq.s32.totalorder %s15, 1
      %p68 = scmp.ne.s32.totalorder %s63, %s65
      %p69 = scmp.eq.s32.totalorder %s15, 0
      %p70 = por %p68, %p69
      %p71 = scmp.ne.s32.totalorder %s63, %s65
      %p72 = scmp.eq.s32.totalorder %s20, 1
      %p73 = por %p71, %p72
      %p74 = scmp.ne.s32.totalorder %s65, %s66
      %p75 = scmp.eq.s32.totalorder %s20, 0
      %p76 = por %p74, %p75
      %p77 = scmp.ne.s32.totalorder %s65, %s66
      %p78 = scmp.eq.s32.totalorder %s21, 1
      %p79 = por %p77, %p78
      %p81 = scmp.ne.s32.totalorder %s66, %s80
      %p82 = scmp.eq.s32.totalorder %s21, 0
      %p83 = por %p81, %p82
      %s85 = sadd.s32 %s84, 1
      %p88 = scmp.eq.s32.totalorder %s15, 1
      %p89 = scmp.ne.s32.totalorder %s84, %s86
      %p90 = scmp.eq.s32.totalorder %s15, 0
      %p91 = por %p89, %p90
      %p92 = scmp.ne.s32.totalorder %s84, %s86
      %p93 = scmp.eq.s32.totalorder %s20, 1
      %p94 = por %p92, %p93
      %p95 = scmp.ne.s32.totalorder %s86, %s87
      %p96 = scmp.eq.s32.totalorder %s20, 0
      %p97 = por %p95, %p96
      %p98 = scmp.ne.s32.totalorder %s86, %s87
      %p99 = scmp.eq.s32.totalorder %s21, 1
      %p100 = por %p98, %p99
      %p102 = scmp.ne.s32.totalorder %s87, %s101
      %p103 = scmp.eq.s32.totalorder %s21, 0
      %p104 = por %p102, %p103
      %s105 = ssub.s32 %s22, %s34
      %s106 = ssub.s32 %s23, %s30
      %s107 = sor.u32 %s105, %s106
      %p108 = scmp.eq.s32.totalorder %s107, 0
      %s110 = sadd.s32 %s109, 1
      %s111 = scalar_select %p108, %s109, %s110
      %p114 = pneg %p108
      %p115 = scmp.eq.s32.totalorder %s15, 1
      %p116 = por %p114, %p115
      %p117 = scmp.ne.s32.totalorder %s109, %s112
      %p118 = scmp.eq.s32.totalorder %s15, 0
      %p119 = por %p117, %p118
      %p120 = scmp.ne.s32.totalorder %s109, %s112
      %p121 = scmp.eq.s32.totalorder %s20, 1
      %p122 = por %p120, %p121
      %p123 = scmp.ne.s32.totalorder %s112, %s113
      %p124 = scmp.eq.s32.totalorder %s20, 0
      %p125 = por %p123, %p124
      %p126 = scmp.ne.s32.totalorder %s112, %s113
      %p127 = scmp.eq.s32.totalorder %s21, 1
      %p128 = por %p126, %p127
      %p130 = scmp.ne.s32.totalorder %s113, %s129
      %p131 = scmp.eq.s32.totalorder %s21, 0
      %p132 = por %p130, %p131
      %p133 = scmp.le.s32.totalorder 1, %s15
      %p134 = scmp.lt.s32.totalorder %s15, 3
      %p135 = pnand %p133, %p134
      %p136 = pneg %p135
      // Predicated region
      $region9: #{tpu_custom_call.1} parent=5 // pred_check
        _
      $region10: #{tpu_custom_call.1} parent=5 // pred_check_branch
        %138 = sbr.rel (%p135) target = $region12
      $region11: #{tpu_custom_call.1} parent=5 // pred_region
        %s139 = ssub.s32 %s15, 1
        // Predicated region
        $region13: #{tpu_custom_call.1} parent=11 // pred_check
          %p140 = pneg %p76
        $region14: #{tpu_custom_call.1} parent=11 // pred_check_branch
          %142 = sbr.rel (%p140) target = $region16
        $region15: #{tpu_custom_call.1} parent=11 // pred_region
          _
        $region16: #{tpu_custom_call.1} parent=11 // pred_fallthru
          _
        // Predicated region
        $region17: #{tpu_custom_call.1} parent=11 // pred_check
          %p143 = pneg %p97
        $region18: #{tpu_custom_call.1} parent=11 // pred_check_branch
          %145 = sbr.rel (%p143) target = $region20
        $region19: #{tpu_custom_call.1} parent=11 // pred_region
          _
        $region20: #{tpu_custom_call.1} parent=11 // pred_fallthru
          _
      $region12: #{tpu_custom_call.1} parent=5 // pred_fallthru
        _
      %p146 = scmp.lt.s32.totalorder %s15, 2
      // Predicated region
      $region21: #{tpu_custom_call.1} parent=5 // pred_check
        %p147 = pneg %p146
      $region22: #{tpu_custom_call.1} parent=5 // pred_check_branch
        %149 = sbr.rel (%p147) target = $region24
      $region23: #{tpu_custom_call.1} parent=5 // pred_region
        // Predicated region
        $region25: #{tpu_custom_call.1} parent=23 // pred_check
          %p150 = pneg %p49
        $region26: #{tpu_custom_call.1} parent=23 // pred_check_branch
          %152 = sbr.rel (%p150) target = $region28
        $region27: #{tpu_custom_call.1} parent=23 // pred_region
          %s153 = sand.u32 %s39, 1
          %s154 = scalar_lea.sflag [#allocation3], %s153
          %s155 = sand.u32 %s39, 1
          %s156 = smul.addr %s155, 32
          %s157 = scalar_lea.vmem [#allocation2], %s156
          %s159 = ssub.s32 512, 512
          %160 = vsyncadd %s154, %s159
          %s161 = smul.addr %s23, 8
          %s162 = smul.addr %s22, 8
          %s163 = sadd.s32 %s161, %s162
          %s164 = smul.addr %s163, 64
          %s165 = scalar_lea.hbm %s0, %s164
          %s166 = sshll.u32 %s157, 4
          %s167 = int_to_ptr.vmem [resolvable:$true] %s166
          %172 = dma.hbm_to_vmem [thread:$0]  %s165, 512, %s167, %s154, 128, 128, 8
        $region28: #{tpu_custom_call.1} parent=23 // pred_fallthru
          _
      $region24: #{tpu_custom_call.1} parent=5 // pred_fallthru
        _
      %p173 = scmp.le.s32.totalorder 1, %s15
      %p174 = scmp.lt.s32.totalorder %s15, 3
      %p175 = pnand %p173, %p174
      %p176 = pneg %p175
      // Predicated region
      $region29: #{tpu_custom_call.1} parent=5 // pred_check
        _
      $region30: #{tpu_custom_call.1} parent=5 // pred_check_branch
        %178 = sbr.rel (%p175) target = $region32
      $region31: #{tpu_custom_call.1} parent=5 // pred_region
        %s179 = ssub.s32 %s15, 1
        %s180 = sand.u32 %s42, 1
        %s181 = scalar_lea.sflag [#allocation3], %s180
        %s182 = sand.u32 %s42, 1
        %s183 = smul.addr %s182, 32
        %s184 = scalar_lea.vmem [#allocation2], %s183
        // Predicated region
        $region33: #{tpu_custom_call.1} parent=31 // pred_check
          %p185 = pneg %p55
        $region34: #{tpu_custom_call.1} parent=31 // pred_check_branch
          %187 = sbr.rel (%p185) target = $region36
        $region35: #{tpu_custom_call.1} parent=31 // pred_region
          %188 = dma.done %s181, 512
        $region36: #{tpu_custom_call.1} parent=31 // pred_fallthru
          _
        %s189 = sand.u32 %s42, 1
        %s190 = scalar_lea.sflag [#allocation3], %s189
        %s191 = sand.u32 %s42, 1
        %s192 = smul.addr %s191, 32
        %s193 = scalar_lea.vmem [#allocation2], %s192
        %p194 = pneg %p55
        %p195 = pneg %p52
        %p196 = pneg %p76
        %p197 = pneg %p73
        %p198 = pneg %p97
        %p199 = pneg %p94
        %p200 = pneg %p125
        %p201 = pneg %p122
        %s202 = sand.u32 %s112, 1
        %s203 = scalar_lea.sflag [#allocation4], %s202
        %s204 = sand.u32 %s112, 1
        %s205 = smul.addr %s204, 8
        %s206 = scalar_lea.vmem [#allocation5], %s205
        %v208 = vld [vmem:[%s1] sm:$0xf]
        %v209 = vld [vmem:[%s1 + $0x4] sm:$0xf]
        %v210 = vld [vmem:[%s184] sm:$0xf]
        %v211 = vld [vmem:[%s184 + $0x8] sm:$0xf]
        %v212 = vld [vmem:[%s184 + $0x10] sm:$0xf]
        %v213 = vld [vmem:[%s184 + $0x18] sm:$0xf]
        %s214 = scalar_lea.vmem %s1, 8
        %v215 = vld [vmem:[%s214] sm:$0xf]
        %v216 = vld [vmem:[%s214 + $0x4] sm:$0xf]
        %v217 = vld [vmem:[%s184] sm:$0xff]
        %v218 = vld [vmem:[%s184 + $0x8] sm:$0xff]
        %v219 = vld [vmem:[%s184 + $0x10] sm:$0xff]
        %v220 = vld [vmem:[%s184 + $0x18] sm:$0xff]
        %v223 = vunpack.c.l.b16 %v215
        %v224 = vunpack.c.l.b16 %v216
        %v225 = vpack.c.b16 %v224, %v223
        %v230 = vunpack.c.l.b16 %v217
        %v231 = vunpack.c.h.b16 %v217
        %v232 = vunpack.c.l.b16 %v218
        %v233 = vunpack.c.h.b16 %v218
        %v234 = vunpack.c.l.b16 %v219
        %v235 = vunpack.c.h.b16 %v219
        %v236 = vunpack.c.l.b16 %v220
        %v237 = vunpack.c.h.b16 %v220
        %v238 = vpack.c.b16 %v232, %v230
        %v239 = vpack.c.b16 %v233, %v231
        %v240 = vpack.c.b16 %v236, %v234
        %v241 = vpack.c.b16 %v237, %v235
        %242 = vrot.lane.b32.xlu0 %v238, 119
        %v243 = vpop.permute.xlu0 %242
        %244 = vrot.lane.b32.xlu0 %v239, 119
        %v245 = vpop.permute.xlu0 %244
        %246 = vrot.lane.b32.xlu0 %v240, 119
        %v247 = vpop.permute.xlu0 %246
        %248 = vrot.lane.b32.xlu0 %v241, 119
        %v249 = vpop.permute.xlu0 %248
        %vm250 = vcmask 973824
        %v251 = vsel %vm250, %v243, %v245
        %v252 = vsel %vm250, %v247, %v249
        %vm255 = vcmask 261120
        %v257 = vsel %vm255, %v225, 0
        %259 = vmatprep.subr.bf16.mxu0 0
        %260 = vmatpush1.bf16.msra.mxu0 %v251
        %261 = vmatprep.subr.bf16.mxu0 0
        %262 = vmatpush1.bf16.msra.mxu0 %v252
        %263 = vmatprep.subr.bf16.mxu0 0
        %264 = vmatpush1.bf16.msra.mxu0 0
        %265 = vmatprep.subr.bf16.mxu0 0
        %266 = vmatpush1.bf16.msra.mxu0 0
        %267 = vmatprep.subr.bf16.mxu0 0
        %268 = vmatpush1.bf16.msra.mxu0 0
        %269 = vmatprep.subr.bf16.mxu0 0
        %270 = vmatpush1.bf16.msra.mxu0 0
        %271 = vmatprep.subr.bf16.mxu0 0
        %272 = vmatpush1.bf16.msra.mxu0 0
        %273 = vmatprep.subr.bf16.mxu0 0
        %274 = vmatpush1.bf16.msra.mxu0 0
        %275 = vmatprep.subr.bf16.mxu0 0
        %276 = vmatpush1.bf16.msra.mxu0 0
        %277 = vmatprep.subr.bf16.mxu0 0
        %278 = vmatpush1.bf16.msra.mxu0 0
        %279 = vmatprep.subr.bf16.mxu0 0
        %280 = vmatpush1.bf16.msra.mxu0 0
        %281 = vmatprep.subr.bf16.mxu0 0
        %282 = vmatpush1.bf16.msra.mxu0 0
        %283 = vmatprep.subr.bf16.mxu0 0
        %284 = vmatpush1.bf16.msra.mxu0 0
        %285 = vmatprep.subr.bf16.mxu0 0
        %286 = vmatpush1.bf16.msra.mxu0 0
        %287 = vmatprep.subr.bf16.mxu0 0
        %288 = vmatpush1.bf16.msra.mxu0 0
        %289 = vmatprep.subr.bf16.mxu0 0
        %290 = vmatpush1.bf16.msra.mxu0 0
        %291 = vmatprep.mubr.bf16.mxu0 0
        %292 = vmatmul.mubr.bf16.gmra.mrb[0].mxu0 %v257
        %v293 = vpop.f32.mrb[0].mxu0
        %v294 = vadd.f32 0.0, %v293
        %v295 = vpop.f32.mrb[0].mxu0
        %v296 = vpop.f32.mrb[0].mxu0
        %v297 = vadd.f32 0.0, %v296
        %v298 = vpop.f32.mrb[0].mxu0
        %299 = vdwg.mxu0
        %v302 = vunpack.c.l.b16 %v208
        %v303 = vunpack.c.l.b16 %v209
        %v304 = vpack.c.b16 %v303, %v302
        %v309 = vunpack.c.l.b16 %v210
        %v310 = vunpack.c.l.b16 %v211
        %v311 = vunpack.c.l.b16 %v212
        %v312 = vunpack.c.l.b16 %v213
        %v313 = vpack.c.b16 %v310, %v309
        %v314 = vpack.c.b16 %v312, %v311
        %v318 = vsel %vm255, %v304, 0
        %320 = vmatprep.subr.bf16.mxu0 0
        %321 = vmatpush1.bf16.msra.mxu0 %v313
        %322 = vmatprep.subr.bf16.mxu0 0
        %323 = vmatpush1.bf16.msra.mxu0 %v314
        %324 = vmatprep.subr.bf16.mxu0 0
        %325 = vmatpush1.bf16.msra.mxu0 0
        %326 = vmatprep.subr.bf16.mxu0 0
        %327 = vmatpush1.bf16.msra.mxu0 0
        %328 = vmatprep.subr.bf16.mxu0 0
        %329 = vmatpush1.bf16.msra.mxu0 0
        %330 = vmatprep.subr.bf16.mxu0 0
        %331 = vmatpush1.bf16.msra.mxu0 0
        %332 = vmatprep.subr.bf16.mxu0 0
        %333 = vmatpush1.bf16.msra.mxu0 0
        %334 = vmatprep.subr.bf16.mxu0 0
        %335 = vmatpush1.bf16.msra.mxu0 0
        %336 = vmatprep.subr.bf16.mxu0 0
        %337 = vmatpush1.bf16.msra.mxu0 0
        %338 = vmatprep.subr.bf16.mxu0 0
        %339 = vmatpush1.bf16.msra.mxu0 0
        %340 = vmatprep.subr.bf16.mxu0 0
        %341 = vmatpush1.bf16.msra.mxu0 0
        %342 = vmatprep.subr.bf16.mxu0 0
        %343 = vmatpush1.bf16.msra.mxu0 0
        %344 = vmatprep.subr.bf16.mxu0 0
        %345 = vmatpush1.bf16.msra.mxu0 0
        %346 = vmatprep.subr.bf16.mxu0 0
        %347 = vmatpush1.bf16.msra.mxu0 0
        %348 = vmatprep.subr.bf16.mxu0 0
        %349 = vmatpush1.bf16.msra.mxu0 0
        %350 = vmatprep.subr.bf16.mxu0 0
        %351 = vmatpush1.bf16.msra.mxu0 0
        %352 = vmatprep.mubr.bf16.mxu0 0
        %353 = vmatmul.mubr.bf16.gmra.mrb[0].mxu0 %v318
        %v354 = vpop.f32.mrb[0].mxu0
        %v355 = vadd.f32 %v294, %v354
        %v356 = vpop.f32.mrb[0].mxu0
        %v357 = vpop.f32.mrb[0].mxu0
        %v358 = vadd.f32 %v297, %v357
        %v359 = vpop.f32.mrb[0].mxu0
        %360 = vdwg.mxu0
        %v361 = vld [vmem:[%s2] sm:$0xff]
        %v362 = vld [vmem:[%s2 + $0x8] sm:$0xff]
        %364 = vset.pattern.permute.xlu0 0
        %365 = vperm.xlu0 %364, %v361
        %v366 = vpop.permute.xlu0 %365
        %369 = vset.pattern.permute.xlu0 0
        %370 = vperm.xlu0 %369, %v362
        %v371 = vpop.permute.xlu0 %370
        %v373 = vadd.f32 %v355, %v366
        %v374 = vadd.f32 %v358, %v371
        %v375 = vpack.c.bf16 %v374, %v373
        %v377 = vunpack.c.l.b16 %v375
        %v378 = vunpack.c.h.b16 %v375
        %v379 = vpack.c.b16 %v377, %v377
        %v380 = vpack.c.b16 %v378, %v378
        %383 = vst [vmem:[%s206] sm:$0xf] %v379
        %384 = vst [vmem:[%s206 + $0x4] sm:$0xf] %v380
        %s385 = sand.u32 %s112, 1
        %s386 = scalar_lea.sflag [#allocation4], %s385
        %s387 = sand.u32 %s112, 1
        %s388 = smul.addr %s387, 8
        %s389 = scalar_lea.vmem [#allocation5], %s388
        // Predicated region
        $region37: #{tpu_custom_call.1} parent=31 // pred_check
          %p390 = pneg %p122
        $region38: #{tpu_custom_call.1} parent=31 // pred_check_branch
          %392 = sbr.rel (%p390) target = $region40
        $region39: #{tpu_custom_call.1} parent=31 // pred_region
          %s394 = ssub.s32 128, 128
          %395 = vsyncadd %s386, %s394
          %s396 = smul.addr %s24, 2
          %s397 = sadd.s32 %s25, %s396
          %s398 = smul.addr %s397, 64
          %s399 = scalar_lea.hbm %s3, %s398
          %s400 = sshll.u32 %s389, 4
          %s401 = int_to_ptr.vmem [resolvable:$true] %s400
          %406 = dma.vmem_to_hbm [thread:$0]  %s401, 128, %s399, %s386, 64, 64, 4
        $region40: #{tpu_custom_call.1} parent=31 // pred_fallthru
          _
      $region32: #{tpu_custom_call.1} parent=5 // pred_fallthru
        _
      %p407 = scmp.le.s32.totalorder 2, %s15
      // Predicated region
      $region41: #{tpu_custom_call.1} parent=5 // pred_check
        %p408 = pneg %p407
      $region42: #{tpu_custom_call.1} parent=5 // pred_check_branch
        %410 = sbr.rel (%p408) target = $region44
      $region43: #{tpu_custom_call.1} parent=5 // pred_region
        %s411 = ssub.s32 %s15, 2
        // Predicated region
        $region45: #{tpu_custom_call.1} parent=43 // pred_check
          %p412 = pneg %p128
        $region46: #{tpu_custom_call.1} parent=43 // pred_check_branch
          %414 = sbr.rel (%p412) target = $region48
        $region47: #{tpu_custom_call.1} parent=43 // pred_region
          %s415 = sand.u32 %s113, 1
          %s416 = scalar_lea.sflag [#allocation4], %s415
          %s417 = sand.u32 %s113, 1
          %s418 = smul.addr %s417, 8
          %s419 = scalar_lea.vmem [#allocation5], %s418
          %420 = dma.done %s416, 128
        $region48: #{tpu_custom_call.1} parent=43 // pred_fallthru
          _
      $region44: #{tpu_custom_call.1} parent=5 // pred_fallthru
        _
    $region6: #{tpu_custom_call.1} parent=1 // loop_footer
      %s19 = sadd.s32 1, %s15
    $region7: #{tpu_custom_call.1} parent=1 // loop_footer_branch
      %14 = sbr.rel target = $region3
    $region8: #{tpu_custom_call.1} parent=1 // loop_exit
      _
    %421 = vsyncpa [#allocation3], 1
    %s422 = scalar_lea.sflag [#allocation3], 1
    %423 = vsyncpa %s422, 1
    %424 = vsyncpa [#allocation4], 1
    %s425 = scalar_lea.sflag [#allocation4], 1
    %426 = vsyncpa %s425, 1

</llo_original>
